<compile_context>
chip_gen: v7x
topology: tpu7x:2x2x1
jax: 0.10.0
libtpu: 0.0.40
codegen_flags: <defaults>
</compile_context>

<pallas_src>
import functools

import jax
import jax.numpy as jnp
from jax.experimental import pallas as pl
from jax.experimental.pallas import tpu as pltpu


def _round_up(x, m):
    return ((x + m - 1) // m) * m


def _pick_tile(n_pad, pref):
    """Largest multiple-of-128 divisor of n_pad that is <= pref (n_pad % 128 == 0)."""
    t = max(128, min(pref, n_pad))
    t = (t // 128) * 128
    while n_pad % t:
        t -= 128
    return t


def _mp_kernel(a_ref, xk_ref, xi_ref, w1_ref, b1_ref, w2_ref, b2_ref, deg_ref,
               out_ref, acc_ref, *, neighbor_aggr):
    k = pl.program_id(1)

    @pl.when(k == 0)
    def _():
        acc_ref[...] = jnp.zeros_like(acc_ref)

    # Z2 for this K block of nodes: [TK, F_pad], MXU matmul with f32 accumulate.
    z2 = jnp.dot(xk_ref[...], w2_ref[...],
                 preferred_element_type=jnp.float32) + b2_ref[...]

    # Aggregate the neighbors covered by this A tile (bf16 0/1 -> exact f32).
    acc_ref[...] += jnp.dot(a_ref[...].astype(jnp.float32), z2,
                            preferred_element_type=jnp.float32)

    @pl.when(k == pl.num_programs(1) - 1)
    def _():
        # Self term for this row block.
        z1 = jnp.dot(xi_ref[...], w1_ref[...],
                     preferred_element_type=jnp.float32) + b1_ref[...]
        agg = acc_ref[...]
        if neighbor_aggr == 'mean':
            # Normalize the small [TM, F_pad] aggregate instead of rescaling the
            # O(N^2) adjacency. No zero-degree guard: matches PyTorch reference.
            agg = agg * pl.reciprocal(deg_ref[...], approx=False)
        out_ref[...] = (z1 + agg).astype(out_ref.dtype)


def message_passing(X, A, W1, b1, W2, b2, neighbor_aggr='sum',
                    tm_pref=512, tk_pref=512):
    """X: [N, F_in], A: [N, N], W*: [F_out, F_in] (PyTorch layout), b*: [F_out]."""
    N, F_in = X.shape
    F_out = W1.shape[0]

    # ---- Glue: pad to lane/sublane-friendly shapes, pre-transpose weights. ----
    N_pad = _round_up(N, 128)
    F_pad = _round_up(F_out, 128)
    TM = _pick_tile(N_pad, tm_pref)
    TK = _pick_tile(N_pad, tk_pref)

    X_pad = jnp.zeros((N_pad, F_in), jnp.float32).at[:N, :].set(
        jnp.asarray(X, jnp.float32))
    A_f32 = jnp.zeros((N_pad, N_pad), jnp.float32).at[:N, :N].set(
        jnp.asarray(A, jnp.float32))
    A_bf16 = A_f32.astype(jnp.bfloat16)      # 0/1 adjacency is exact in bf16

    def pad_w(W):
        Wt = jnp.asarray(W, jnp.float32).T   # [F_in, F_out]
        return jnp.zeros((F_in, F_pad), jnp.float32).at[:, :F_out].set(Wt)

    def pad_b(b):
        return jnp.zeros((1, F_pad), jnp.float32).at[0, :F_out].set(
            jnp.asarray(b, jnp.float32))

    w1_p, w2_p = pad_w(W1), pad_w(W2)
    b1_p, b2_p = pad_b(b1), pad_b(b2)

    if neighbor_aggr == 'mean':
        # Column sums, as in the reference (D = diag(A.sum(0))).
        deg = jnp.sum(A_f32, axis=0).reshape(N_pad, 1)
    else:
        deg = jnp.ones((N_pad, 1), jnp.float32)   # unused by the 'sum' path

    grid = (N_pad // TM, N_pad // TK)
    kernel = functools.partial(_mp_kernel, neighbor_aggr=neighbor_aggr)

    flops = 2 * N_pad * F_in * F_pad * (1 + grid[1]) + 2 * N_pad * N_pad * F_pad
    bytes_accessed = (A_bf16.size * 2 + 2 * X_pad.size * 4
                      + N_pad * F_pad * 4 + (w1_p.size + w2_p.size) * 4)

    out_pad = pl.pallas_call(
        kernel,
        out_shape=jax.ShapeDtypeStruct((N_pad, F_pad), jnp.float32),
        grid_spec=pltpu.PrefetchScalarGridSpec(
            num_scalar_prefetch=0,
            grid=grid,
            in_specs=[
                pl.BlockSpec((TM, TK), lambda i, k: (i, k)),       # A tile (bf16)
                pl.BlockSpec((TK, F_in), lambda i, k: (k, 0)),     # X rows for Z2
                pl.BlockSpec((TM, F_in), lambda i, k: (i, 0)),     # X rows for Z1
                pl.BlockSpec((F_in, F_pad), lambda i, k: (0, 0)),  # W1^T (padded)
                pl.BlockSpec((1, F_pad), lambda i, k: (0, 0)),     # b1
                pl.BlockSpec((F_in, F_pad), lambda i, k: (0, 0)),  # W2^T (padded)
                pl.BlockSpec((1, F_pad), lambda i, k: (0, 0)),     # b2
                pl.BlockSpec((TM, 1), lambda i, k: (i, 0)),        # deg rows
            ],
            out_specs=pl.BlockSpec((TM, F_pad), lambda i, k: (i, 0)),
            scratch_shapes=[pltpu.VMEM((TM, F_pad), jnp.float32)],
        ),
        compiler_params=pltpu.CompilerParams(
            dimension_semantics=("parallel", "arbitrary"),
            vmem_limit_bytes=32 * 1024 * 1024,
        ),
        cost_estimate=pl.CostEstimate(
            flops=flops, transcendentals=0, bytes_accessed=bytes_accessed),
    )(A_bf16, X_pad, X_pad, w1_p, b1_p, w2_p, b2_p, deg)

    return out_pad[:N, :F_out]


def _reference(X, A, W1, b1, W2, b2, neighbor_aggr):
    Z1 = X @ W1.T + b1
    Z2 = X @ W2.T + b2
    if neighbor_aggr == 'sum':
        return Z1 + A @ Z2
    deg = A.sum(0)                        # column sums
    A_norm = A / deg[:, None]             # diag(deg)^-1 @ A
    return Z1 + A_norm @ Z2


if __name__ == "__main__":
    key = jax.random.PRNGKey(0)
    N, input_dim, output_dim = 8, 32, 16

    k_x, k_a, k_w1, k_b1, k_w2, k_b2 = jax.random.split(key, 6)
    X = jax.random.normal(k_x, (N, input_dim), jnp.float32)
    # Random symmetric-ish binary adjacency with self loops (dense, nonneg).
    A_raw = (jax.random.uniform(k_a, (N, N)) > 0.5).astype(jnp.float32)
    A = jnp.clip(A_raw + A_raw.T + jnp.eye(N, dtype=jnp.float32), 0.0, 1.0)

    # Deterministic parameter init (synthetic, matching nn.Linear shapes).
    bound1 = 1.0 / jnp.sqrt(input_dim)
    W1 = jax.random.uniform(k_w1, (output_dim, input_dim), jnp.float32,
                            -bound1, bound1)
    b1 = jax.random.uniform(k_b1, (output_dim,), jnp.float32, -bound1, bound1)
    W2 = jax.random.uniform(k_w2, (output_dim, input_dim), jnp.float32,
                            -bound1, bound1)
    b2 = jax.random.uniform(k_b2, (output_dim,), jnp.float32, -bound1, bound1)

    ok = True
    for aggr in ('sum', 'mean'):
        out = message_passing(X, A, W1, b1, W2, b2, neighbor_aggr=aggr)
        out = jax.block_until_ready(out)
        ref = _reference(X, A, W1, b1, W2, b2, aggr)
        ok = ok and bool(jnp.allclose(out, ref, atol=1e-4, rtol=1e-4))

    if ok:
        print("KERNEL_OK")
</pallas_src>

<mosaic_0001>
module attributes {stable_mosaic.version = 11 : i64} {
  func.func @_mp_kernel(%arg0: i32, %arg1: i32, %arg2: memref<128x128xbf16, #tpu.memory_space<vmem>>, %arg3: memref<128x32xf32, #tpu.memory_space<vmem>>, %arg4: memref<128x32xf32, #tpu.memory_space<vmem>>, %arg5: memref<32x128xf32, #tpu.memory_space<vmem>>, %arg6: memref<1x128xf32, #tpu.memory_space<vmem>>, %arg7: memref<32x128xf32, #tpu.memory_space<vmem>>, %arg8: memref<1x128xf32, #tpu.memory_space<vmem>>, %arg9: memref<128x1xf32, #tpu.memory_space<vmem>>, %arg10: memref<128x128xf32, #tpu.memory_space<vmem>>, %arg11: memref<128x128xf32, #tpu.memory_space<vmem>>) attributes {dimension_semantics = [#tpu.dimension_semantics<parallel>, #tpu.dimension_semantics<arbitrary>], iteration_bounds = array<i64: 1, 1>, scalar_prefetch = 0 : i64, scratch_operands = 1 : i64, tpu.core_type = #tpu.core_type<tc>, window_params = [{transform_indices = @transform_0, window_bounds = array<i64: 128, 128>}, {transform_indices = @transform_1, window_bounds = array<i64: 128, 32>}, {transform_indices = @transform_2, window_bounds = array<i64: 128, 32>}, {pipeline_mode = #tpu.pipeline_mode<synchronous>, transform_indices = @transform_3, window_bounds = array<i64: 32, 128>}, {pipeline_mode = #tpu.pipeline_mode<synchronous>, transform_indices = @transform_4, window_bounds = array<i64: 1, 128>}, {pipeline_mode = #tpu.pipeline_mode<synchronous>, transform_indices = @transform_5, window_bounds = array<i64: 32, 128>}, {pipeline_mode = #tpu.pipeline_mode<synchronous>, transform_indices = @transform_6, window_bounds = array<i64: 1, 128>}, {transform_indices = @transform_7, window_bounds = array<i64: 128, 1>}, {transform_indices = @transform_8, window_bounds = array<i64: 128, 128>}]} {
    %c0_i32 = arith.constant 0 : i32
    %0 = arith.cmpi eq, %arg1, %c0_i32 : i32
    %1 = arith.extui %0 : i1 to i32
    %c0_i32_0 = arith.constant 0 : i32
    %2 = arith.cmpi ne, %1, %c0_i32_0 : i32
    scf.if %2 {
      %cst_15 = arith.constant 0.000000e+00 : f32
      %18 = vector.broadcast %cst_15 : f32 to vector<128x128xf32>
      %c0_16 = arith.constant 0 : index
      %c0_17 = arith.constant 0 : index
      %19 = vector.load %arg11[%c0_16, %c0_17] : memref<128x128xf32, #tpu.memory_space<vmem>>, vector<128x128xf32>
      tpu.vector_store %arg11[%c0_16, %c0_17], %18 {strides = array<i32>} : memref<128x128xf32, #tpu.memory_space<vmem>>, vector<128x128xf32>,
    } else {
    }
    %c0 = arith.constant 0 : index
    %c0_1 = arith.constant 0 : index
    %3 = vector.load %arg3[%c0, %c0_1] : memref<128x32xf32, #tpu.memory_space<vmem>>, vector<128x32xf32>
    %c0_2 = arith.constant 0 : index
    %c0_3 = arith.constant 0 : index
    %4 = vector.load %arg7[%c0_2, %c0_3] : memref<32x128xf32, #tpu.memory_space<vmem>>, vector<32x128xf32>
    %cst = arith.constant dense<0.000000e+00> : vector<128x128xf32>
    %5 = tpu.matmul %3, %4, %cst {dimension_numbers = #tpu.dot_dimension_numbers<[1], [0], [0], [1], [0, 0, 1, 1], [], []>} : vector<128x32xf32>, vector<32x128xf32>, vector<128x128xf32> -> vector<128x128xf32>
    %c0_4 = arith.constant 0 : index
    %c0_5 = arith.constant 0 : index
    %6 = vector.load %arg8[%c0_4, %c0_5] : memref<1x128xf32, #tpu.memory_space<vmem>>, vector<1x128xf32>
    %7 = vector.broadcast %6 : vector<1x128xf32> to vector<128x128xf32>
    %8 = arith.addf %5, %7 : vector<128x128xf32>
    %c0_6 = arith.constant 0 : index
    %c0_7 = arith.constant 0 : index
    %9 = vector.load %arg11[%c0_6, %c0_7] : memref<128x128xf32, #tpu.memory_space<vmem>>, vector<128x128xf32>
    %c0_8 = arith.constant 0 : index
    %c0_9 = arith.constant 0 : index
    %10 = vector.load %arg2[%c0_8, %c0_9] : memref<128x128xbf16, #tpu.memory_space<vmem>>, vector<128x128xbf16>
    %11 = arith.extf %10 : vector<128x128xbf16> to vector<128x128xf32>
    %cst_10 = arith.constant dense<0.000000e+00> : vector<128x128xf32>
    %12 = tpu.matmul %11, %8, %cst_10 {dimension_numbers = #tpu.dot_dimension_numbers<[1], [0], [0], [1], [0, 0, 1, 1], [], []>} : vector<128x128xf32>, vector<128x128xf32>, vector<128x128xf32> -> vector<128x128xf32>
    %13 = arith.addf %9, %12 : vector<128x128xf32>
    %c0_11 = arith.constant 0 : index
    %c0_12 = arith.constant 0 : index
    %14 = vector.load %arg11[%c0_11, %c0_12] : memref<128x128xf32, #tpu.memory_space<vmem>>, vector<128x128xf32>
    tpu.vector_store %arg11[%c0_11, %c0_12], %13 {strides = array<i32>} : memref<128x128xf32, #tpu.memory_space<vmem>>, vector<128x128xf32>,
    %c0_i32_13 = arith.constant 0 : i32
    %15 = arith.cmpi eq, %arg1, %c0_i32_13 : i32
    %16 = arith.extui %15 : i1 to i32
    %c0_i32_14 = arith.constant 0 : i32
    %17 = arith.cmpi ne, %16, %c0_i32_14 : i32
    scf.if %17 {
      %c0_15 = arith.constant 0 : index
      %c0_16 = arith.constant 0 : index
      %18 = vector.load %arg4[%c0_15, %c0_16] : memref<128x32xf32, #tpu.memory_space<vmem>>, vector<128x32xf32>
      %c0_17 = arith.constant 0 : index
      %c0_18 = arith.constant 0 : index
      %19 = vector.load %arg5[%c0_17, %c0_18] : memref<32x128xf32, #tpu.memory_space<vmem>>, vector<32x128xf32>
      %cst_19 = arith.constant dense<0.000000e+00> : vector<128x128xf32>
      %20 = tpu.matmul %18, %19, %cst_19 {dimension_numbers = #tpu.dot_dimension_numbers<[1], [0], [0], [1], [0, 0, 1, 1], [], []>} : vector<128x32xf32>, vector<32x128xf32>, vector<128x128xf32> -> vector<128x128xf32>
      %c0_20 = arith.constant 0 : index
      %c0_21 = arith.constant 0 : index
      %21 = vector.load %arg6[%c0_20, %c0_21] : memref<1x128xf32, #tpu.memory_space<vmem>>, vector<1x128xf32>
      %22 = vector.broadcast %21 : vector<1x128xf32> to vector<128x128xf32>
      %23 = arith.addf %20, %22 : vector<128x128xf32>
      %c0_22 = arith.constant 0 : index
      %c0_23 = arith.constant 0 : index
      %24 = vector.load %arg11[%c0_22, %c0_23] : memref<128x128xf32, #tpu.memory_space<vmem>>, vector<128x128xf32>
      %25 = arith.addf %23, %24 : vector<128x128xf32>
      %c0_24 = arith.constant 0 : index
      %c0_25 = arith.constant 0 : index
      %26 = vector.load %arg10[%c0_24, %c0_25] : memref<128x128xf32, #tpu.memory_space<vmem>>, vector<128x128xf32>
      tpu.vector_store %arg10[%c0_24, %c0_25], %25 {strides = array<i32>} : memref<128x128xf32, #tpu.memory_space<vmem>>, vector<128x128xf32>,
    } else {
    }
    return
  }
  func.func @transform_0(%arg0: i32, %arg1: i32) -> (i32, i32) {
    %c0_i32 = arith.constant 0 : i32
    return %arg0, %arg1 : i32, i32
  }
  func.func @transform_1(%arg0: i32, %arg1: i32) -> (i32, i32) {
    %c0_i32 = arith.constant 0 : i32
    %c0_i32_0 = arith.constant 0 : i32
    return %arg1, %c0_i32 : i32, i32
  }
  func.func @transform_2(%arg0: i32, %arg1: i32) -> (i32, i32) {
    %c0_i32 = arith.constant 0 : i32
    %c0_i32_0 = arith.constant 0 : i32
    return %arg0, %c0_i32 : i32, i32
  }
  func.func @transform_3(%arg0: i32, %arg1: i32) -> (i32, i32) {
    %c0_i32 = arith.constant 0 : i32
    %c0_i32_0 = arith.constant 0 : i32
    %c0_i32_1 = arith.constant 0 : i32
    return %c0_i32, %c0_i32_0 : i32, i32
  }
  func.func @transform_4(%arg0: i32, %arg1: i32) -> (i32, i32) {
    %c0_i32 = arith.constant 0 : i32
    %c0_i32_0 = arith.constant 0 : i32
    %c0_i32_1 = arith.constant 0 : i32
    return %c0_i32, %c0_i32_0 : i32, i32
  }
  func.func @transform_5(%arg0: i32, %arg1: i32) -> (i32, i32) {
    %c0_i32 = arith.constant 0 : i32
    %c0_i32_0 = arith.constant 0 : i32
    %c0_i32_1 = arith.constant 0 : i32
    return %c0_i32, %c0_i32_0 : i32, i32
  }
  func.func @transform_6(%arg0: i32, %arg1: i32) -> (i32, i32) {
    %c0_i32 = arith.constant 0 : i32
    %c0_i32_0 = arith.constant 0 : i32
    %c0_i32_1 = arith.constant 0 : i32
    return %c0_i32, %c0_i32_0 : i32, i32
  }
  func.func @transform_7(%arg0: i32, %arg1: i32) -> (i32, i32) {
    %c0_i32 = arith.constant 0 : i32
    %c0_i32_0 = arith.constant 0 : i32
    return %arg0, %c0_i32 : i32, i32
  }
  func.func @transform_8(%arg0: i32, %arg1: i32) -> (i32, i32) {
    %c0_i32 = arith.constant 0 : i32
    %c0_i32_0 = arith.constant 0 : i32
    return %arg0, %c0_i32 : i32, i32
  }
}

</mosaic_0001>

<llo_original>
// kernel: tpu_custom_call.1
$region0: #{tpu_custom_call.1}
  #allocation0 [shape = 'u32[]', space=smem, size = 0x4, offset = 0x4, fixed_abs, tag = 'smem constant byte address 0x4 - core index']
  #allocation1 [shape = 'u32[144,128]{1,0:T(1,128)}', space=vmem, size = 0x12000, scoped, tag = 'internal scratch']
  #allocation2 [shape = 'f32[128,128]{1,0:T(8,128)}', space=vmem, size = 0x10000, scoped, tag = 'scratch operand']
  %s0 = inlined_call_operand.vmem [shape: bf16[128,128], index: 0, kind: input, shape index: {}]
  %s1 = inlined_call_operand.vmem [shape: f32[128,32], index: 1, kind: input, shape index: {}]
  %s2 = inlined_call_operand.vmem [shape: f32[128,32], index: 2, kind: input, shape index: {}]
  %s3 = inlined_call_operand.vmem [shape: f32[32,128], index: 3, kind: input, shape index: {}]
  %s4 = inlined_call_operand.vmem [shape: f32[1,128], index: 4, kind: input, shape index: {}]
  %s5 = inlined_call_operand.vmem [shape: f32[32,128], index: 5, kind: input, shape index: {}]
  %s6 = inlined_call_operand.vmem [shape: f32[1,128], index: 6, kind: input, shape index: {}]
  %s7 = inlined_call_operand.vmem [shape: f32[128,1], index: 7, kind: input, shape index: {}]
  %s8 = inlined_call_operand.hbm [shape: f32[128,128], index: 8, kind: output, shape index: {}]
  %s9 = sld [smem:[#allocation0]]
  $region50: #{tpu_custom_call.1} parent=0
    _
  %s11 = ssub.s32 1, %s9
  %s12 = scalar_select 0, %s11, %s9
  $region1: #{tpu_custom_call.1} parent=0
    #allocation3 [shape = 'u8[65536]{0}', space=vmem, size = 0x10000, scoped, tag = 'output window, operand 0, single buffered']
    #allocation4 [shape = 's32[1]{0}', space=sflag, size = 0x4, scoped, tag = 'scoped memory for tpu_custom_call.1']
    %13 = vsyncpa [#allocation4], 0
    // Predicated region
    $region2: #{tpu_custom_call.1} parent=1 // pred_check
      _
    $region3: #{tpu_custom_call.1} parent=1 // pred_check_branch
      %15 = sbr.rel (0) target = $region5
    $region4: #{tpu_custom_call.1} parent=1 // pred_region
      _
    $region5: #{tpu_custom_call.1} parent=1 // pred_fallthru
      _
    // Predicated region
    $region6: #{tpu_custom_call.1} parent=1 // pred_check
      _
    $region7: #{tpu_custom_call.1} parent=1 // pred_check_branch
      %17 = sbr.rel (0) target = $region9
    $region8: #{tpu_custom_call.1} parent=1 // pred_region
      _
    $region9: #{tpu_custom_call.1} parent=1 // pred_fallthru
      _
    // Predicated region
    $region10: #{tpu_custom_call.1} parent=1 // pred_check
      _
    $region11: #{tpu_custom_call.1} parent=1 // pred_check_branch
      %19 = sbr.rel (0) target = $region13
    $region12: #{tpu_custom_call.1} parent=1 // pred_region
      _
    $region13: #{tpu_custom_call.1} parent=1 // pred_fallthru
      _
    // Predicated region
    $region14: #{tpu_custom_call.1} parent=1 // pred_check
      _
    $region15: #{tpu_custom_call.1} parent=1 // pred_check_branch
      %21 = sbr.rel (0) target = $region17
    $region16: #{tpu_custom_call.1} parent=1 // pred_region
      _
    $region17: #{tpu_custom_call.1} parent=1 // pred_fallthru
      _
    // Predicated region
    $region18: #{tpu_custom_call.1} parent=1 // pred_check
      _
    $region19: #{tpu_custom_call.1} parent=1 // pred_check_branch
      %23 = sbr.rel (0) target = $region21
    $region20: #{tpu_custom_call.1} parent=1 // pred_region
      _
    $region21: #{tpu_custom_call.1} parent=1 // pred_fallthru
      _
    // Predicated region
    $region22: #{tpu_custom_call.1} parent=1 // pred_check
      _
    $region23: #{tpu_custom_call.1} parent=1 // pred_check_branch
      %25 = sbr.rel (0) target = $region25
    $region24: #{tpu_custom_call.1} parent=1 // pred_region
      _
    $region25: #{tpu_custom_call.1} parent=1 // pred_fallthru
      _
    // Predicated region
    $region26: #{tpu_custom_call.1} parent=1 // pred_check
      _
    $region27: #{tpu_custom_call.1} parent=1 // pred_check_branch
      %27 = sbr.rel (0) target = $region29
    $region28: #{tpu_custom_call.1} parent=1 // pred_region
      _
    $region29: #{tpu_custom_call.1} parent=1 // pred_fallthru
      _
    // Predicated region
    $region30: #{tpu_custom_call.1} parent=1 // pred_check
      _
    $region31: #{tpu_custom_call.1} parent=1 // pred_check_branch
      %29 = sbr.rel (0) target = $region33
    $region32: #{tpu_custom_call.1} parent=1 // pred_region
      _
    $region33: #{tpu_custom_call.1} parent=1 // pred_fallthru
      _
    %p30 = scmp.eq.s32.totalorder 0, 0
    // Predicated region
    $region34: #{tpu_custom_call.1} parent=1 // pred_check
      %p31 = pneg %p30
    $region35: #{tpu_custom_call.1} parent=1 // pred_check_branch
      %33 = sbr.rel (%p31) target = $region37
    $region36: #{tpu_custom_call.1} parent=1 // pred_region
      %34 = vst [vmem:[#allocation2] sm:$0xff] 0.0
      %35 = vst [vmem:[#allocation2 + $0x8] sm:$0xff] 0.0
      %36 = vst [vmem:[#allocation2 + $0x10] sm:$0xff] 0.0
      %37 = vst [vmem:[#allocation2 + $0x18] sm:$0xff] 0.0
      %38 = vst [vmem:[#allocation2 + $0x20] sm:$0xff] 0.0
      %39 = vst [vmem:[#allocation2 + $0x28] sm:$0xff] 0.0
      %40 = vst [vmem:[#allocation2 + $0x30] sm:$0xff] 0.0
      %41 = vst [vmem:[#allocation2 + $0x38] sm:$0xff] 0.0
      %42 = vst [vmem:[#allocation2 + $0x40] sm:$0xff] 0.0
      %43 = vst [vmem:[#allocation2 + $0x48] sm:$0xff] 0.0
      %44 = vst [vmem:[#allocation2 + $0x50] sm:$0xff] 0.0
      %45 = vst [vmem:[#allocation2 + $0x58] sm:$0xff] 0.0
      %46 = vst [vmem:[#allocation2 + $0x60] sm:$0xff] 0.0
      %47 = vst [vmem:[#allocation2 + $0x68] sm:$0xff] 0.0
      %48 = vst [vmem:[#allocation2 + $0x70] sm:$0xff] 0.0
      %49 = vst [vmem:[#allocation2 + $0x78] sm:$0xff] 0.0
    $region37: #{tpu_custom_call.1} parent=1 // pred_fallthru
      _
    %v50 = vld [vmem:[%s1] sm:$0xff]
    %v51 = vld [vmem:[%s1 + $0x8] sm:$0xff]
    %v52 = vld [vmem:[%s1 + $0x10] sm:$0xff]
    %v53 = vld [vmem:[%s1 + $0x18] sm:$0xff]
    %v54 = vld [vmem:[%s1 + $0x20] sm:$0xff]
    %v55 = vld [vmem:[%s1 + $0x28] sm:$0xff]
    %v56 = vld [vmem:[%s1 + $0x30] sm:$0xff]
    %v57 = vld [vmem:[%s1 + $0x38] sm:$0xff]
    %v58 = vld [vmem:[%s1 + $0x40] sm:$0xff]
    %v59 = vld [vmem:[%s1 + $0x48] sm:$0xff]
    %v60 = vld [vmem:[%s1 + $0x50] sm:$0xff]
    %v61 = vld [vmem:[%s1 + $0x58] sm:$0xff]
    %v62 = vld [vmem:[%s1 + $0x60] sm:$0xff]
    %v63 = vld [vmem:[%s1 + $0x68] sm:$0xff]
    %v64 = vld [vmem:[%s1 + $0x70] sm:$0xff]
    %v65 = vld [vmem:[%s1 + $0x78] sm:$0xff]
    %v66 = vld [vmem:[%s5] sm:$0xff]
    %v67 = vld [vmem:[%s5 + $0x8] sm:$0xff]
    %v68 = vld [vmem:[%s5 + $0x10] sm:$0xff]
    %v69 = vld [vmem:[%s5 + $0x18] sm:$0xff]
    %v70 = vld [vmem:[%s6] sm:$0x1]
    %v72 = vlaneseq
    %v73 = vshrl.u32 %v72, 7
    %v74 = vsub.s32 0, %v73
    %v75 = vrot.slane %v70, %v74
    %vm77 = vcmask 261120
    %v79 = vsel %vm77, %v50, 0
    %v82 = vsel %vm77, %v51, 0
    %v85 = vsel %vm77, %v52, 0
    %v88 = vsel %vm77, %v53, 0
    %v91 = vsel %vm77, %v54, 0
    %v94 = vsel %vm77, %v55, 0
    %v97 = vsel %vm77, %v56, 0
    %v100 = vsel %vm77, %v57, 0
    %v103 = vsel %vm77, %v58, 0
    %v106 = vsel %vm77, %v59, 0
    %v109 = vsel %vm77, %v60, 0
    %v112 = vsel %vm77, %v61, 0
    %v115 = vsel %vm77, %v62, 0
    %v118 = vsel %vm77, %v63, 0
    %v121 = vsel %vm77, %v64, 0
    %v124 = vsel %vm77, %v65, 0
    %126 = vmatprep.subr.mxu0 0.0
    %127 = vmatpush1.msra.mxu0 %v66
    %128 = vmatprep.subr.mxu0 0.0
    %129 = vmatpush1.msra.mxu0 %v67
    %130 = vmatprep.subr.mxu0 0.0
    %131 = vmatpush1.msra.mxu0 %v68
    %132 = vmatprep.subr.mxu0 0.0
    %133 = vmatpush1.msra.mxu0 %v69
    %134 = vmatprep.subr.mxu0 0.0
    %135 = vmatpush1.msra.mxu0 0.0
    %136 = vmatprep.subr.mxu0 0.0
    %137 = vmatpush1.msra.mxu0 0.0
    %138 = vmatprep.subr.mxu0 0.0
    %139 = vmatpush1.msra.mxu0 0.0
    %140 = vmatprep.subr.mxu0 0.0
    %141 = vmatpush1.msra.mxu0 0.0
    %142 = vmatprep.subr.mxu0 0.0
    %143 = vmatpush1.msra.mxu0 0.0
    %144 = vmatprep.subr.mxu0 0.0
    %145 = vmatpush1.msra.mxu0 0.0
    %146 = vmatprep.subr.mxu0 0.0
    %147 = vmatpush1.msra.mxu0 0.0
    %148 = vmatprep.subr.mxu0 0.0
    %149 = vmatpush1.msra.mxu0 0.0
    %150 = vmatprep.subr.mxu0 0.0
    %151 = vmatpush1.msra.mxu0 0.0
    %152 = vmatprep.subr.mxu0 0.0
    %153 = vmatpush1.msra.mxu0 0.0
    %154 = vmatprep.subr.mxu0 0.0
    %155 = vmatpush1.msra.mxu0 0.0
    %156 = vmatprep.subr.mxu0 0.0
    %157 = vmatpush1.msra.mxu0 0.0
    %158 = vmatprep.subr.mxu0 0.0
    %159 = vmatpush1.msra.mxu0 0.0
    %160 = vmatprep.subr.mxu0 0.0
    %161 = vmatpush1.msra.mxu0 0.0
    %162 = vmatprep.subr.mxu0 0.0
    %163 = vmatpush1.msra.mxu0 0.0
    %164 = vmatprep.subr.mxu0 0.0
    %165 = vmatpush1.msra.mxu0 0.0
    %166 = vmatprep.subr.mxu0 0.0
    %167 = vmatpush1.msra.mxu0 0.0
    %168 = vmatprep.subr.mxu0 0.0
    %169 = vmatpush1.msra.mxu0 0.0
    %170 = vmatprep.subr.mxu0 0.0
    %171 = vmatpush1.msra.mxu0 0.0
    %172 = vmatprep.subr.mxu0 0.0
    %173 = vmatpush1.msra.mxu0 0.0
    %174 = vmatprep.subr.mxu0 0.0
    %175 = vmatpush1.msra.mxu0 0.0
    %176 = vmatprep.subr.mxu0 0.0
    %177 = vmatpush1.msra.mxu0 0.0
    %178 = vmatprep.subr.mxu0 0.0
    %179 = vmatpush1.msra.mxu0 0.0
    %180 = vmatprep.subr.mxu0 0.0
    %181 = vmatpush1.msra.mxu0 0.0
    %182 = vmatprep.subr.mxu0 0.0
    %183 = vmatpush1.msra.mxu0 0.0
    %184 = vmatprep.subr.mxu0 0.0
    %185 = vmatpush1.msra.mxu0 0.0
    %186 = vmatprep.subr.mxu0 0.0
    %187 = vmatpush1.msra.mxu0 0.0
    %188 = vmatprep.subr.mxu0 0.0
    %189 = vmatpush1.msra.mxu0 0.0
    %190 = vmatprep.mubr.f32.mxu0 0.0
    %191 = vmatmul.mubr.f32.gmra.mrb[0].mxu0 %v79
    %v192 = vpop.f32.mrb[0].mxu0
    %v193 = vadd.f32 %v75, %v192
    %v194 = vpop.f32.mrb[0].mxu0
    %195 = vmatprep.mubr.f32.mxu0 0.0
    %196 = vmatmul.mubr.f32.gmra.mrb[0].mxu0 %v82
    %v197 = vpop.f32.mrb[0].mxu0
    %v198 = vadd.f32 %v75, %v197
    %v199 = vpop.f32.mrb[0].mxu0
    %200 = vmatprep.mubr.f32.mxu0 0.0
    %201 = vmatmul.mubr.f32.gmra.mrb[0].mxu0 %v85
    %v202 = vpop.f32.mrb[0].mxu0
    %v203 = vadd.f32 %v75, %v202
    %v204 = vpop.f32.mrb[0].mxu0
    %205 = vmatprep.mubr.f32.mxu0 0.0
    %206 = vmatmul.mubr.f32.gmra.mrb[0].mxu0 %v88
    %v207 = vpop.f32.mrb[0].mxu0
    %v208 = vadd.f32 %v75, %v207
    %v209 = vpop.f32.mrb[0].mxu0
    %210 = vmatprep.mubr.f32.mxu0 0.0
    %211 = vmatmul.mubr.f32.gmra.mrb[0].mxu0 %v91
    %v212 = vpop.f32.mrb[0].mxu0
    %v213 = vadd.f32 %v75, %v212
    %v214 = vpop.f32.mrb[0].mxu0
    %215 = vmatprep.mubr.f32.mxu0 0.0
    %216 = vmatmul.mubr.f32.gmra.mrb[0].mxu0 %v94
    %v217 = vpop.f32.mrb[0].mxu0
    %v218 = vadd.f32 %v75, %v217
    %v219 = vpop.f32.mrb[0].mxu0
    %220 = vmatprep.mubr.f32.mxu0 0.0
    %221 = vmatmul.mubr.f32.gmra.mrb[0].mxu0 %v97
    %v222 = vpop.f32.mrb[0].mxu0
    %v223 = vadd.f32 %v75, %v222
    %v224 = vpop.f32.mrb[0].mxu0
    %225 = vmatprep.mubr.f32.mxu0 0.0
    %226 = vmatmul.mubr.f32.gmra.mrb[0].mxu0 %v100
    %v227 = vpop.f32.mrb[0].mxu0
    %v228 = vadd.f32 %v75, %v227
    %v229 = vpop.f32.mrb[0].mxu0
    %230 = vmatprep.mubr.f32.mxu0 0.0
    %231 = vmatmul.mubr.f32.gmra.mrb[0].mxu0 %v103
    %v232 = vpop.f32.mrb[0].mxu0
    %v233 = vadd.f32 %v75, %v232
    %v234 = vpop.f32.mrb[0].mxu0
    %235 = vmatprep.mubr.f32.mxu0 0.0
    %236 = vmatmul.mubr.f32.gmra.mrb[0].mxu0 %v106
    %v237 = vpop.f32.mrb[0].mxu0
    %v238 = vadd.f32 %v75, %v237
    %v239 = vpop.f32.mrb[0].mxu0
    %240 = vmatprep.mubr.f32.mxu0 0.0
    %241 = vmatmul.mubr.f32.gmra.mrb[0].mxu0 %v109
    %v242 = vpop.f32.mrb[0].mxu0
    %v243 = vadd.f32 %v75, %v242
    %v244 = vpop.f32.mrb[0].mxu0
    %245 = vmatprep.mubr.f32.mxu0 0.0
    %246 = vmatmul.mubr.f32.gmra.mrb[0].mxu0 %v112
    %v247 = vpop.f32.mrb[0].mxu0
    %v248 = vadd.f32 %v75, %v247
    %v249 = vpop.f32.mrb[0].mxu0
    %250 = vmatprep.mubr.f32.mxu0 0.0
    %251 = vmatmul.mubr.f32.gmra.mrb[0].mxu0 %v115
    %v252 = vpop.f32.mrb[0].mxu0
    %v253 = vadd.f32 %v75, %v252
    %v254 = vpop.f32.mrb[0].mxu0
    %255 = vmatprep.mubr.f32.mxu0 0.0
    %256 = vmatmul.mubr.f32.gmra.mrb[0].mxu0 %v118
    %v257 = vpop.f32.mrb[0].mxu0
    %v258 = vadd.f32 %v75, %v257
    %v259 = vpop.f32.mrb[0].mxu0
    %260 = vmatprep.mubr.f32.mxu0 0.0
    %261 = vmatmul.mubr.f32.gmra.mrb[0].mxu0 %v121
    %v262 = vpop.f32.mrb[0].mxu0
    %v263 = vadd.f32 %v75, %v262
    %v264 = vpop.f32.mrb[0].mxu0
    %265 = vmatprep.mubr.f32.mxu0 0.0
    %266 = vmatmul.mubr.f32.gmra.mrb[0].mxu0 %v124
    %v267 = vpop.f32.mrb[0].mxu0
    %v268 = vadd.f32 %v75, %v267
    %v269 = vpop.f32.mrb[0].mxu0
    %270 = vdwg.mxu0
    %v271 = vld [vmem:[#allocation2] sm:$0xff]
    %v272 = vld [vmem:[#allocation2 + $0x8] sm:$0xff]
    %v273 = vld [vmem:[#allocation2 + $0x10] sm:$0xff]
    %v274 = vld [vmem:[#allocation2 + $0x18] sm:$0xff]
    %v275 = vld [vmem:[#allocation2 + $0x20] sm:$0xff]
    %v276 = vld [vmem:[#allocation2 + $0x28] sm:$0xff]
    %v277 = vld [vmem:[#allocation2 + $0x30] sm:$0xff]
    %v278 = vld [vmem:[#allocation2 + $0x38] sm:$0xff]
    %v279 = vld [vmem:[#allocation2 + $0x40] sm:$0xff]
    %v280 = vld [vmem:[#allocation2 + $0x48] sm:$0xff]
    %v281 = vld [vmem:[#allocation2 + $0x50] sm:$0xff]
    %v282 = vld [vmem:[#allocation2 + $0x58] sm:$0xff]
    %v283 = vld [vmem:[#allocation2 + $0x60] sm:$0xff]
    %v284 = vld [vmem:[#allocation2 + $0x68] sm:$0xff]
    %v285 = vld [vmem:[#allocation2 + $0x70] sm:$0xff]
    %v286 = vld [vmem:[#allocation2 + $0x78] sm:$0xff]
    %v287 = vld [vmem:[%s0] sm:$0xf]
    %v288 = vld [vmem:[%s0 + $0x4] sm:$0xf]
    %v289 = vld [vmem:[%s0 + $0x8] sm:$0xf]
    %v290 = vld [vmem:[%s0 + $0xc] sm:$0xf]
    %v291 = vld [vmem:[%s0 + $0x10] sm:$0xf]
    %v292 = vld [vmem:[%s0 + $0x14] sm:$0xf]
    %v293 = vld [vmem:[%s0 + $0x18] sm:$0xf]
    %v294 = vld [vmem:[%s0 + $0x1c] sm:$0xf]
    %v295 = vld [vmem:[%s0 + $0x20] sm:$0xf]
    %v296 = vld [vmem:[%s0 + $0x24] sm:$0xf]
    %v297 = vld [vmem:[%s0 + $0x28] sm:$0xf]
    %v298 = vld [vmem:[%s0 + $0x2c] sm:$0xf]
    %v299 = vld [vmem:[%s0 + $0x30] sm:$0xf]
    %v300 = vld [vmem:[%s0 + $0x34] sm:$0xf]
    %v301 = vld [vmem:[%s0 + $0x38] sm:$0xf]
    %v302 = vld [vmem:[%s0 + $0x3c] sm:$0xf]
    %v303 = vunpack.c.l.bf16 %v287
    %v304 = vunpack.c.l.bf16 %v288
    %v305 = vunpack.c.l.bf16 %v289
    %v306 = vunpack.c.l.bf16 %v290
    %v307 = vunpack.c.l.bf16 %v291
    %v308 = vunpack.c.l.bf16 %v292
    %v309 = vunpack.c.l.bf16 %v293
    %v310 = vunpack.c.l.bf16 %v294
    %v311 = vunpack.c.l.bf16 %v295
    %v312 = vunpack.c.l.bf16 %v296
    %v313 = vunpack.c.l.bf16 %v297
    %v314 = vunpack.c.l.bf16 %v298
    %v315 = vunpack.c.l.bf16 %v299
    %v316 = vunpack.c.l.bf16 %v300
    %v317 = vunpack.c.l.bf16 %v301
    %v318 = vunpack.c.l.bf16 %v302
    %319 = vmatprep.subr.mxu0 0.0
    %320 = vmatpush1.msra.mxu0 %v193
    %321 = vmatprep.subr.mxu0 0.0
    %322 = vmatpush1.msra.mxu0 %v198
    %323 = vmatprep.subr.mxu0 0.0
    %324 = vmatpush1.msra.mxu0 %v203
    %325 = vmatprep.subr.mxu0 0.0
    %326 = vmatpush1.msra.mxu0 %v208
    %327 = vmatprep.subr.mxu0 0.0
    %328 = vmatpush1.msra.mxu0 %v213
    %329 = vmatprep.subr.mxu0 0.0
    %330 = vmatpush1.msra.mxu0 %v218
    %331 = vmatprep.subr.mxu0 0.0
    %332 = vmatpush1.msra.mxu0 %v223
    %333 = vmatprep.subr.mxu0 0.0
    %334 = vmatpush1.msra.mxu0 %v228
    %335 = vmatprep.subr.mxu0 0.0
    %336 = vmatpush1.msra.mxu0 %v233
    %337 = vmatprep.subr.mxu0 0.0
    %338 = vmatpush1.msra.mxu0 %v238
    %339 = vmatprep.subr.mxu0 0.0
    %340 = vmatpush1.msra.mxu0 %v243
    %341 = vmatprep.subr.mxu0 0.0
    %342 = vmatpush1.msra.mxu0 %v248
    %343 = vmatprep.subr.mxu0 0.0
    %344 = vmatpush1.msra.mxu0 %v253
    %345 = vmatprep.subr.mxu0 0.0
    %346 = vmatpush1.msra.mxu0 %v258
    %347 = vmatprep.subr.mxu0 0.0
    %348 = vmatpush1.msra.mxu0 %v263
    %349 = vmatprep.subr.mxu0 0.0
    %350 = vmatpush1.msra.mxu0 %v268
    %351 = vmatprep.subr.mxu0 0.0
    %352 = vmatpush1.msra.mxu0 0.0
    %353 = vmatprep.subr.mxu0 0.0
    %354 = vmatpush1.msra.mxu0 0.0
    %355 = vmatprep.subr.mxu0 0.0
    %356 = vmatpush1.msra.mxu0 0.0
    %357 = vmatprep.subr.mxu0 0.0
    %358 = vmatpush1.msra.mxu0 0.0
    %359 = vmatprep.subr.mxu0 0.0
    %360 = vmatpush1.msra.mxu0 0.0
    %361 = vmatprep.subr.mxu0 0.0
    %362 = vmatpush1.msra.mxu0 0.0
    %363 = vmatprep.subr.mxu0 0.0
    %364 = vmatpush1.msra.mxu0 0.0
    %365 = vmatprep.subr.mxu0 0.0
    %366 = vmatpush1.msra.mxu0 0.0
    %367 = vmatprep.subr.mxu0 0.0
    %368 = vmatpush1.msra.mxu0 0.0
    %369 = vmatprep.subr.mxu0 0.0
    %370 = vmatpush1.msra.mxu0 0.0
    %371 = vmatprep.subr.mxu0 0.0
    %372 = vmatpush1.msra.mxu0 0.0
    %373 = vmatprep.subr.mxu0 0.0
    %374 = vmatpush1.msra.mxu0 0.0
    %375 = vmatprep.subr.mxu0 0.0
    %376 = vmatpush1.msra.mxu0 0.0
    %377 = vmatprep.subr.mxu0 0.0
    %378 = vmatpush1.msra.mxu0 0.0
    %379 = vmatprep.subr.mxu0 0.0
    %380 = vmatpush1.msra.mxu0 0.0
    %381 = vmatprep.subr.mxu0 0.0
    %382 = vmatpush1.msra.mxu0 0.0
    %383 = vmatprep.mubr.f32.mxu0 0.0
    %384 = vmatmul.mubr.f32.gmra.mrb[0].mxu0 %v303
    %v385 = vpop.f32.mrb[0].mxu0
    %v386 = vadd.f32 0.0, %v385
    %v387 = vpop.f32.mrb[0].mxu0
    %388 = vmatprep.mubr.f32.mxu0 0.0
    %389 = vmatmul.mubr.f32.gmra.mrb[0].mxu0 %v304
    %v390 = vpop.f32.mrb[0].mxu0
    %v391 = vadd.f32 0.0, %v390
    %v392 = vpop.f32.mrb[0].mxu0
    %393 = vmatprep.mubr.f32.mxu0 0.0
    %394 = vmatmul.mubr.f32.gmra.mrb[0].mxu0 %v305
    %v395 = vpop.f32.mrb[0].mxu0
    %v396 = vadd.f32 0.0, %v395
    %v397 = vpop.f32.mrb[0].mxu0
    %398 = vmatprep.mubr.f32.mxu0 0.0
    %399 = vmatmul.mubr.f32.gmra.mrb[0].mxu0 %v306
    %v400 = vpop.f32.mrb[0].mxu0
    %v401 = vadd.f32 0.0, %v400
    %v402 = vpop.f32.mrb[0].mxu0
    %403 = vmatprep.mubr.f32.mxu0 0.0
    %404 = vmatmul.mubr.f32.gmra.mrb[0].mxu0 %v307
    %v405 = vpop.f32.mrb[0].mxu0
    %v406 = vadd.f32 0.0, %v405
    %v407 = vpop.f32.mrb[0].mxu0
    %408 = vmatprep.mubr.f32.mxu0 0.0
    %409 = vmatmul.mubr.f32.gmra.mrb[0].mxu0 %v308
    %v410 = vpop.f32.mrb[0].mxu0
    %v411 = vadd.f32 0.0, %v410
    %v412 = vpop.f32.mrb[0].mxu0
    %413 = vmatprep.mubr.f32.mxu0 0.0
    %414 = vmatmul.mubr.f32.gmra.mrb[0].mxu0 %v309
    %v415 = vpop.f32.mrb[0].mxu0
    %v416 = vadd.f32 0.0, %v415
    %v417 = vpop.f32.mrb[0].mxu0
    %418 = vmatprep.mubr.f32.mxu0 0.0
    %419 = vmatmul.mubr.f32.gmra.mrb[0].mxu0 %v310
    %v420 = vpop.f32.mrb[0].mxu0
    %v421 = vadd.f32 0.0, %v420
    %v422 = vpop.f32.mrb[0].mxu0
    %423 = vmatprep.mubr.f32.mxu0 0.0
    %424 = vmatmul.mubr.f32.gmra.mrb[0].mxu0 %v311
    %v425 = vpop.f32.mrb[0].mxu0
    %v426 = vadd.f32 0.0, %v425
    %v427 = vpop.f32.mrb[0].mxu0
    %428 = vmatprep.mubr.f32.mxu0 0.0
    %429 = vmatmul.mubr.f32.gmra.mrb[0].mxu0 %v312
    %v430 = vpop.f32.mrb[0].mxu0
    %v431 = vadd.f32 0.0, %v430
    %v432 = vpop.f32.mrb[0].mxu0
    %433 = vmatprep.mubr.f32.mxu0 0.0
    %434 = vmatmul.mubr.f32.gmra.mrb[0].mxu0 %v313
    %v435 = vpop.f32.mrb[0].mxu0
    %v436 = vadd.f32 0.0, %v435
    %v437 = vpop.f32.mrb[0].mxu0
    %438 = vmatprep.mubr.f32.mxu0 0.0
    %439 = vmatmul.mubr.f32.gmra.mrb[0].mxu0 %v314
    %v440 = vpop.f32.mrb[0].mxu0
    %v441 = vadd.f32 0.0, %v440
    %v442 = vpop.f32.mrb[0].mxu0
    %443 = vmatprep.mubr.f32.mxu0 0.0
    %444 = vmatmul.mubr.f32.gmra.mrb[0].mxu0 %v315
    %v445 = vpop.f32.mrb[0].mxu0
    %v446 = vadd.f32 0.0, %v445
    %v447 = vpop.f32.mrb[0].mxu0
    %448 = vmatprep.mubr.f32.mxu0 0.0
    %449 = vmatmul.mubr.f32.gmra.mrb[0].mxu0 %v316
    %v450 = vpop.f32.mrb[0].mxu0
    %v451 = vadd.f32 0.0, %v450
    %v452 = vpop.f32.mrb[0].mxu0
    %453 = vmatprep.mubr.f32.mxu0 0.0
    %454 = vmatmul.mubr.f32.gmra.mrb[0].mxu0 %v317
    %v455 = vpop.f32.mrb[0].mxu0
    %v456 = vadd.f32 0.0, %v455
    %v457 = vpop.f32.mrb[0].mxu0
    %458 = vmatprep.mubr.f32.mxu0 0.0
    %459 = vmatmul.mubr.f32.gmra.mrb[0].mxu0 %v318
    %v460 = vpop.f32.mrb[0].mxu0
    %v461 = vadd.f32 0.0, %v460
    %v462 = vpop.f32.mrb[0].mxu0
    %463 = vdwg.mxu0
    %v464 = vadd.f32 %v271, %v386
    %v465 = vadd.f32 %v272, %v391
    %v466 = vadd.f32 %v273, %v396
    %v467 = vadd.f32 %v274, %v401
    %v468 = vadd.f32 %v275, %v406
    %v469 = vadd.f32 %v276, %v411
    %v470 = vadd.f32 %v277, %v416
    %v471 = vadd.f32 %v278, %v421
    %v472 = vadd.f32 %v279, %v426
    %v473 = vadd.f32 %v280, %v431
    %v474 = vadd.f32 %v281, %v436
    %v475 = vadd.f32 %v282, %v441
    %v476 = vadd.f32 %v283, %v446
    %v477 = vadd.f32 %v284, %v451
    %v478 = vadd.f32 %v285, %v456
    %v479 = vadd.f32 %v286, %v461
    %480 = vst [vmem:[#allocation2] sm:$0xff] %v464
    %481 = vst [vmem:[#allocation2 + $0x8] sm:$0xff] %v465
    %482 = vst [vmem:[#allocation2 + $0x10] sm:$0xff] %v466
    %483 = vst [vmem:[#allocation2 + $0x18] sm:$0xff] %v467
    %484 = vst [vmem:[#allocation2 + $0x20] sm:$0xff] %v468
    %485 = vst [vmem:[#allocation2 + $0x28] sm:$0xff] %v469
    %486 = vst [vmem:[#allocation2 + $0x30] sm:$0xff] %v470
    %487 = vst [vmem:[#allocation2 + $0x38] sm:$0xff] %v471
    %488 = vst [vmem:[#allocation2 + $0x40] sm:$0xff] %v472
    %489 = vst [vmem:[#allocation2 + $0x48] sm:$0xff] %v473
    %490 = vst [vmem:[#allocation2 + $0x50] sm:$0xff] %v474
    %491 = vst [vmem:[#allocation2 + $0x58] sm:$0xff] %v475
    %492 = vst [vmem:[#allocation2 + $0x60] sm:$0xff] %v476
    %493 = vst [vmem:[#allocation2 + $0x68] sm:$0xff] %v477
    %494 = vst [vmem:[#allocation2 + $0x70] sm:$0xff] %v478
    %495 = vst [vmem:[#allocation2 + $0x78] sm:$0xff] %v479
    // Predicated region
    $region38: #{tpu_custom_call.1} parent=1 // pred_check
      %p496 = pneg %p30
    $region39: #{tpu_custom_call.1} parent=1 // pred_check_branch
      %498 = sbr.rel (%p496) target = $region41
    $region40: #{tpu_custom_call.1} parent=1 // pred_region
      %v499 = vld [vmem:[%s2] sm:$0xff]
      %v500 = vld [vmem:[%s2 + $0x8] sm:$0xff]
      %v501 = vld [vmem:[%s2 + $0x10] sm:$0xff]
      %v502 = vld [vmem:[%s2 + $0x18] sm:$0xff]
      %v503 = vld [vmem:[%s2 + $0x20] sm:$0xff]
      %v504 = vld [vmem:[%s2 + $0x28] sm:$0xff]
      %v505 = vld [vmem:[%s2 + $0x30] sm:$0xff]
      %v506 = vld [vmem:[%s2 + $0x38] sm:$0xff]
      %v507 = vld [vmem:[%s2 + $0x40] sm:$0xff]
      %v508 = vld [vmem:[%s2 + $0x48] sm:$0xff]
      %v509 = vld [vmem:[%s2 + $0x50] sm:$0xff]
      %v510 = vld [vmem:[%s2 + $0x58] sm:$0xff]
      %v511 = vld [vmem:[%s2 + $0x60] sm:$0xff]
      %v512 = vld [vmem:[%s2 + $0x68] sm:$0xff]
      %v513 = vld [vmem:[%s2 + $0x70] sm:$0xff]
      %v514 = vld [vmem:[%s2 + $0x78] sm:$0xff]
      %v515 = vld [vmem:[%s3] sm:$0xff]
      %v516 = vld [vmem:[%s3 + $0x8] sm:$0xff]
      %v517 = vld [vmem:[%s3 + $0x10] sm:$0xff]
      %v518 = vld [vmem:[%s3 + $0x18] sm:$0xff]
      %v519 = vld [vmem:[%s4] sm:$0x1]
      %v521 = vlaneseq
      %v522 = vshrl.u32 %v521, 7
      %v523 = vsub.s32 0, %v522
      %v524 = vrot.slane %v519, %v523
      %v527 = vsel %vm77, %v499, 0
      %v530 = vsel %vm77, %v500, 0
      %v533 = vsel %vm77, %v501, 0
      %v536 = vsel %vm77, %v502, 0
      %v539 = vsel %vm77, %v503, 0
      %v542 = vsel %vm77, %v504, 0
      %v545 = vsel %vm77, %v505, 0
      %v548 = vsel %vm77, %v506, 0
      %v551 = vsel %vm77, %v507, 0
      %v554 = vsel %vm77, %v508, 0
      %v557 = vsel %vm77, %v509, 0
      %v560 = vsel %vm77, %v510, 0
      %v563 = vsel %vm77, %v511, 0
      %v566 = vsel %vm77, %v512, 0
      %v569 = vsel %vm77, %v513, 0
      %v572 = vsel %vm77, %v514, 0
      %574 = vmatprep.subr.mxu0 0.0
      %575 = vmatpush1.msra.mxu0 %v515
      %576 = vmatprep.subr.mxu0 0.0
      %577 = vmatpush1.msra.mxu0 %v516
      %578 = vmatprep.subr.mxu0 0.0
      %579 = vmatpush1.msra.mxu0 %v517
      %580 = vmatprep.subr.mxu0 0.0
      %581 = vmatpush1.msra.mxu0 %v518
      %582 = vmatprep.subr.mxu0 0.0
      %583 = vmatpush1.msra.mxu0 0.0
      %584 = vmatprep.subr.mxu0 0.0
      %585 = vmatpush1.msra.mxu0 0.0
      %586 = vmatprep.subr.mxu0 0.0
      %587 = vmatpush1.msra.mxu0 0.0
      %588 = vmatprep.subr.mxu0 0.0
      %589 = vmatpush1.msra.mxu0 0.0
      %590 = vmatprep.subr.mxu0 0.0
      %591 = vmatpush1.msra.mxu0 0.0
      %592 = vmatprep.subr.mxu0 0.0
      %593 = vmatpush1.msra.mxu0 0.0
      %594 = vmatprep.subr.mxu0 0.0
      %595 = vmatpush1.msra.mxu0 0.0
      %596 = vmatprep.subr.mxu0 0.0
      %597 = vmatpush1.msra.mxu0 0.0
      %598 = vmatprep.subr.mxu0 0.0
      %599 = vmatpush1.msra.mxu0 0.0
      %600 = vmatprep.subr.mxu0 0.0
      %601 = vmatpush1.msra.mxu0 0.0
      %602 = vmatprep.subr.mxu0 0.0
      %603 = vmatpush1.msra.mxu0 0.0
      %604 = vmatprep.subr.mxu0 0.0
      %605 = vmatpush1.msra.mxu0 0.0
      %606 = vmatprep.subr.mxu0 0.0
      %607 = vmatpush1.msra.mxu0 0.0
      %608 = vmatprep.subr.mxu0 0.0
      %609 = vmatpush1.msra.mxu0 0.0
      %610 = vmatprep.subr.mxu0 0.0
      %611 = vmatpush1.msra.mxu0 0.0
      %612 = vmatprep.subr.mxu0 0.0
      %613 = vmatpush1.msra.mxu0 0.0
      %614 = vmatprep.subr.mxu0 0.0
      %615 = vmatpush1.msra.mxu0 0.0
      %616 = vmatprep.subr.mxu0 0.0
      %617 = vmatpush1.msra.mxu0 0.0
      %618 = vmatprep.subr.mxu0 0.0
      %619 = vmatpush1.msra.mxu0 0.0
      %620 = vmatprep.subr.mxu0 0.0
      %621 = vmatpush1.msra.mxu0 0.0
      %622 = vmatprep.subr.mxu0 0.0
      %623 = vmatpush1.msra.mxu0 0.0
      %624 = vmatprep.subr.mxu0 0.0
      %625 = vmatpush1.msra.mxu0 0.0
      %626 = vmatprep.subr.mxu0 0.0
      %627 = vmatpush1.msra.mxu0 0.0
      %628 = vmatprep.subr.mxu0 0.0
      %629 = vmatpush1.msra.mxu0 0.0
      %630 = vmatprep.subr.mxu0 0.0
      %631 = vmatpush1.msra.mxu0 0.0
      %632 = vmatprep.subr.mxu0 0.0
      %633 = vmatpush1.msra.mxu0 0.0
      %634 = vmatprep.subr.mxu0 0.0
      %635 = vmatpush1.msra.mxu0 0.0
      %636 = vmatprep.subr.mxu0 0.0
      %637 = vmatpush1.msra.mxu0 0.0
      %638 = vmatprep.mubr.f32.mxu0 0.0
      %639 = vmatmul.mubr.f32.gmra.mrb[0].mxu0 %v527
      %v640 = vpop.f32.mrb[0].mxu0
      %v641 = vadd.f32 %v524, %v640
      %v642 = vpop.f32.mrb[0].mxu0
      %643 = vmatprep.mubr.f32.mxu0 0.0
      %644 = vmatmul.mubr.f32.gmra.mrb[0].mxu0 %v530
      %v645 = vpop.f32.mrb[0].mxu0
      %v646 = vadd.f32 %v524, %v645
      %v647 = vpop.f32.mrb[0].mxu0
      %648 = vmatprep.mubr.f32.mxu0 0.0
      %649 = vmatmul.mubr.f32.gmra.mrb[0].mxu0 %v533
      %v650 = vpop.f32.mrb[0].mxu0
      %v651 = vadd.f32 %v524, %v650
      %v652 = vpop.f32.mrb[0].mxu0
      %653 = vmatprep.mubr.f32.mxu0 0.0
      %654 = vmatmul.mubr.f32.gmra.mrb[0].mxu0 %v536
      %v655 = vpop.f32.mrb[0].mxu0
      %v656 = vadd.f32 %v524, %v655
      %v657 = vpop.f32.mrb[0].mxu0
      %658 = vmatprep.mubr.f32.mxu0 0.0
      %659 = vmatmul.mubr.f32.gmra.mrb[0].mxu0 %v539
      %v660 = vpop.f32.mrb[0].mxu0
      %v661 = vadd.f32 %v524, %v660
      %v662 = vpop.f32.mrb[0].mxu0
      %663 = vmatprep.mubr.f32.mxu0 0.0
      %664 = vmatmul.mubr.f32.gmra.mrb[0].mxu0 %v542
      %v665 = vpop.f32.mrb[0].mxu0
      %v666 = vadd.f32 %v524, %v665
      %v667 = vpop.f32.mrb[0].mxu0
      %668 = vmatprep.mubr.f32.mxu0 0.0
      %669 = vmatmul.mubr.f32.gmra.mrb[0].mxu0 %v545
      %v670 = vpop.f32.mrb[0].mxu0
      %v671 = vadd.f32 %v524, %v670
      %v672 = vpop.f32.mrb[0].mxu0
      %673 = vmatprep.mubr.f32.mxu0 0.0
      %674 = vmatmul.mubr.f32.gmra.mrb[0].mxu0 %v548
      %v675 = vpop.f32.mrb[0].mxu0
      %v676 = vadd.f32 %v524, %v675
      %v677 = vpop.f32.mrb[0].mxu0
      %678 = vmatprep.mubr.f32.mxu0 0.0
      %679 = vmatmul.mubr.f32.gmra.mrb[0].mxu0 %v551
      %v680 = vpop.f32.mrb[0].mxu0
      %v681 = vadd.f32 %v524, %v680
      %v682 = vpop.f32.mrb[0].mxu0
      %683 = vmatprep.mubr.f32.mxu0 0.0
      %684 = vmatmul.mubr.f32.gmra.mrb[0].mxu0 %v554
      %v685 = vpop.f32.mrb[0].mxu0
      %v686 = vadd.f32 %v524, %v685
      %v687 = vpop.f32.mrb[0].mxu0
      %688 = vmatprep.mubr.f32.mxu0 0.0
      %689 = vmatmul.mubr.f32.gmra.mrb[0].mxu0 %v557
      %v690 = vpop.f32.mrb[0].mxu0
      %v691 = vadd.f32 %v524, %v690
      %v692 = vpop.f32.mrb[0].mxu0
      %693 = vmatprep.mubr.f32.mxu0 0.0
      %694 = vmatmul.mubr.f32.gmra.mrb[0].mxu0 %v560
      %v695 = vpop.f32.mrb[0].mxu0
      %v696 = vadd.f32 %v524, %v695
      %v697 = vpop.f32.mrb[0].mxu0
      %698 = vmatprep.mubr.f32.mxu0 0.0
      %699 = vmatmul.mubr.f32.gmra.mrb[0].mxu0 %v563
      %v700 = vpop.f32.mrb[0].mxu0
      %v701 = vadd.f32 %v524, %v700
      %v702 = vpop.f32.mrb[0].mxu0
      %703 = vmatprep.mubr.f32.mxu0 0.0
      %704 = vmatmul.mubr.f32.gmra.mrb[0].mxu0 %v566
      %v705 = vpop.f32.mrb[0].mxu0
      %v706 = vadd.f32 %v524, %v705
      %v707 = vpop.f32.mrb[0].mxu0
      %708 = vmatprep.mubr.f32.mxu0 0.0
      %709 = vmatmul.mubr.f32.gmra.mrb[0].mxu0 %v569
      %v710 = vpop.f32.mrb[0].mxu0
      %v711 = vadd.f32 %v524, %v710
      %v712 = vpop.f32.mrb[0].mxu0
      %713 = vmatprep.mubr.f32.mxu0 0.0
      %714 = vmatmul.mubr.f32.gmra.mrb[0].mxu0 %v572
      %v715 = vpop.f32.mrb[0].mxu0
      %v716 = vadd.f32 %v524, %v715
      %v717 = vpop.f32.mrb[0].mxu0
      %718 = vdwg.mxu0
      %v719 = vld [vmem:[#allocation2] sm:$0xff]
      %v720 = vld [vmem:[#allocation2 + $0x8] sm:$0xff]
      %v721 = vld [vmem:[#allocation2 + $0x10] sm:$0xff]
      %v722 = vld [vmem:[#allocation2 + $0x18] sm:$0xff]
      %v723 = vld [vmem:[#allocation2 + $0x20] sm:$0xff]
      %v724 = vld [vmem:[#allocation2 + $0x28] sm:$0xff]
      %v725 = vld [vmem:[#allocation2 + $0x30] sm:$0xff]
      %v726 = vld [vmem:[#allocation2 + $0x38] sm:$0xff]
      %v727 = vld [vmem:[#allocation2 + $0x40] sm:$0xff]
      %v728 = vld [vmem:[#allocation2 + $0x48] sm:$0xff]
      %v729 = vld [vmem:[#allocation2 + $0x50] sm:$0xff]
      %v730 = vld [vmem:[#allocation2 + $0x58] sm:$0xff]
      %v731 = vld [vmem:[#allocation2 + $0x60] sm:$0xff]
      %v732 = vld [vmem:[#allocation2 + $0x68] sm:$0xff]
      %v733 = vld [vmem:[#allocation2 + $0x70] sm:$0xff]
      %v734 = vld [vmem:[#allocation2 + $0x78] sm:$0xff]
      %v735 = vadd.f32 %v641, %v719
      %v736 = vadd.f32 %v646, %v720
      %v737 = vadd.f32 %v651, %v721
      %v738 = vadd.f32 %v656, %v722
      %v739 = vadd.f32 %v661, %v723
      %v740 = vadd.f32 %v666, %v724
      %v741 = vadd.f32 %v671, %v725
      %v742 = vadd.f32 %v676, %v726
      %v743 = vadd.f32 %v681, %v727
      %v744 = vadd.f32 %v686, %v728
      %v745 = vadd.f32 %v691, %v729
      %v746 = vadd.f32 %v696, %v730
      %v747 = vadd.f32 %v701, %v731
      %v748 = vadd.f32 %v706, %v732
      %v749 = vadd.f32 %v711, %v733
      %v750 = vadd.f32 %v716, %v734
      %751 = vst [vmem:[#allocation3] sm:$0xff] %v735
      %752 = vst [vmem:[#allocation3 + $0x8] sm:$0xff] %v736
      %753 = vst [vmem:[#allocation3 + $0x10] sm:$0xff] %v737
      %754 = vst [vmem:[#allocation3 + $0x18] sm:$0xff] %v738
      %755 = vst [vmem:[#allocation3 + $0x20] sm:$0xff] %v739
      %756 = vst [vmem:[#allocation3 + $0x28] sm:$0xff] %v740
      %757 = vst [vmem:[#allocation3 + $0x30] sm:$0xff] %v741
      %758 = vst [vmem:[#allocation3 + $0x38] sm:$0xff] %v742
      %759 = vst [vmem:[#allocation3 + $0x40] sm:$0xff] %v743
      %760 = vst [vmem:[#allocation3 + $0x48] sm:$0xff] %v744
      %761 = vst [vmem:[#allocation3 + $0x50] sm:$0xff] %v745
      %762 = vst [vmem:[#allocation3 + $0x58] sm:$0xff] %v746
      %763 = vst [vmem:[#allocation3 + $0x60] sm:$0xff] %v747
      %764 = vst [vmem:[#allocation3 + $0x68] sm:$0xff] %v748
      %765 = vst [vmem:[#allocation3 + $0x70] sm:$0xff] %v749
      %766 = vst [vmem:[#allocation3 + $0x78] sm:$0xff] %v750
    $region41: #{tpu_custom_call.1} parent=1 // pred_fallthru
      _
    // Predicated region
    $region42: #{tpu_custom_call.1} parent=1 // pred_check
      _
    $region43: #{tpu_custom_call.1} parent=1 // pred_check_branch
      %768 = sbr.rel (0) target = $region45
    $region44: #{tpu_custom_call.1} parent=1 // pred_region
      %s770 = ssub.s32 2048, 2048
      %771 = vsyncadd [#allocation4], %s770
      %s772 = sshll.u32 [#allocation3], 4
      %s773 = int_to_ptr.vmem [resolvable:$true] %s772
      %778 = dma.vmem_to_hbm [thread:$0]  %s773, 2048, %s8, [#allocation4], 128, 128, 8
    $region45: #{tpu_custom_call.1} parent=1 // pred_fallthru
      _
    // Predicated region
    $region46: #{tpu_custom_call.1} parent=1 // pred_check
      _
    $region47: #{tpu_custom_call.1} parent=1 // pred_check_branch
      %780 = sbr.rel (0) target = $region49
    $region48: #{tpu_custom_call.1} parent=1 // pred_region
      %781 = dma.done [#allocation4], 2048
    $region49: #{tpu_custom_call.1} parent=1 // pred_fallthru
      _
    %782 = vsyncpa [#allocation4], 1

</llo_original>
